<compile_context>
chip_gen: v5e
topology: v5e:2x2
jax: 0.10.0
libtpu: 0.0.40
codegen_flags: <defaults>
</compile_context>

<pallas_src>
import functools
import math

import jax
import jax.numpy as jnp
from jax import lax
from jax.experimental import pallas as pl
from jax.experimental.pallas import tpu as pltpu


def make_critic_kernel(compute_dtype=jnp.float32):
    """Build the kernel body; matmuls accumulate in fp32, epilogue is fp32."""

    def critic_kernel(sa_ref, w12_ref, b12_ref, w3_ref, b3_ref, w4_ref, b4_ref,
                      out_ref):
        cd = compute_dtype

        # Fused l1 + l2: relu(cat(s, a) @ blockdiag(W1, W2) + [b1 | b2]).
        h = jnp.dot(sa_ref[...].astype(cd), w12_ref[...].astype(cd),
                    preferred_element_type=jnp.float32)
        h = jnp.maximum(h + b12_ref[...], 0.0)

        # l3 (W3 passed un-split; no in-kernel ref slicing).
        x = jnp.dot(h.astype(cd), w3_ref[...].astype(cd),
                    preferred_element_type=jnp.float32)
        x = jnp.maximum(x + b3_ref[...], 0.0)

        # l4 (out_features == 1): contract W4 (1, H) with x (TB, H) on the last
        # dim so the result is a lane-dense (1, TB) row instead of a masked
        # (TB, 1) column store.
        q = lax.dot_general(w4_ref[...].astype(cd), x.astype(cd),
                            dimension_numbers=(((1,), (1,)), ((), ())),
                            preferred_element_type=jnp.float32)
        out_ref[...] = q + b4_ref[...]

    return critic_kernel


def _fuse_params(params):
    """Wrapper-side layout plumbing: build the fused operands the kernel wants."""
    w1, b1, w2, b2, w3, b3, w4, b4 = params
    s, h2 = w1.shape
    a = w2.shape[0]
    # Block-diagonal W12 so cat(s, a) @ W12 == [s @ W1, a @ W2].
    w12 = jnp.zeros((s + a, 2 * h2), jnp.float32)
    w12 = w12.at[:s, :h2].set(w1)
    w12 = w12.at[s:, h2:].set(w2)
    b12 = jnp.concatenate([b1, b2], axis=1)          # (1, H)
    w4_row = jnp.transpose(w4)                       # (1, H)
    return w12, b12, w3, b3, w4_row, b4


@functools.partial(jax.jit, static_argnames=("block_b", "compute_dtype"))
def critic_forward(states, actions, params, *, block_b=512,
                   compute_dtype=jnp.float32):
    """Critic forward; returns q of shape (B, 1), matching the PyTorch module."""
    b = states.shape[0]
    w12, b12, w3, b3, w4_row, b4 = _fuse_params(params)

    sa = jnp.concatenate([states.astype(jnp.float32),
                          actions.astype(jnp.float32)], axis=1)   # (B, S+A)
    f_in = sa.shape[1]
    h = w3.shape[0]

    # Batch tile: full batch when small, otherwise a 512-row (8-sublane /
    # 128-lane aligned) tile.  Pad the batch so the grid divides evenly; padded
    # rows are garbage and sliced off after the call.
    tb = min(block_b, b)
    bp = -(-b // tb) * tb
    if bp != b:
        sa = jnp.pad(sa, ((0, bp - b), (0, 0)))
    grid = (bp // tb,)

    vmem = pltpu.MemorySpace.VMEM
    q_row = pl.pallas_call(
        make_critic_kernel(compute_dtype),
        out_shape=jax.ShapeDtypeStruct((1, bp), jnp.float32),
        grid=grid,
        in_specs=[
            # streaming activation tile
            pl.BlockSpec((tb, f_in), lambda i: (i, 0), memory_space=vmem),
            # weights / biases: same block every step -> VMEM-resident
            pl.BlockSpec((f_in, h), lambda i: (0, 0), memory_space=vmem),
            pl.BlockSpec((1, h), lambda i: (0, 0), memory_space=vmem),
            pl.BlockSpec((h, h), lambda i: (0, 0), memory_space=vmem),
            pl.BlockSpec((1, h), lambda i: (0, 0), memory_space=vmem),
            pl.BlockSpec((1, h), lambda i: (0, 0), memory_space=vmem),
            pl.BlockSpec((1, 1), lambda i: (0, 0), memory_space=vmem),
        ],
        out_specs=pl.BlockSpec((1, tb), lambda i: (0, i), memory_space=vmem),
        compiler_params=pltpu.CompilerParams(
            dimension_semantics=("parallel",)),
    )(sa, w12, b12, w3, b3, w4_row, b4)

    # Lane-dense (1, Bp) row -> (B, 1) to match the PyTorch module's output.
    return jnp.transpose(q_row[:, :b])


def xavier_uniform(key, fan_in, fan_out):
    bound = math.sqrt(6.0 / (fan_in + fan_out))
    # stored as (in, out); xavier bound is symmetric in fan_in/fan_out.
    return jax.random.uniform(key, (fan_in, fan_out), jnp.float32,
                              minval=-bound, maxval=bound)


def init_critic_params(key, state_size, action_size, hidden_size):
    h2 = hidden_size // 2
    k1, k2, k3, k4 = jax.random.split(key, 4)
    w1 = xavier_uniform(k1, state_size, h2)
    b1 = jnp.full((1, h2), 0.01, jnp.float32)
    w2 = xavier_uniform(k2, action_size, h2)
    b2 = jnp.full((1, h2), 0.01, jnp.float32)
    w3 = xavier_uniform(k3, hidden_size, hidden_size)
    b3 = jnp.full((1, hidden_size), 0.01, jnp.float32)
    w4 = xavier_uniform(k4, hidden_size, 1)
    b4 = jnp.full((1, 1), 0.01, jnp.float32)
    return (w1, b1, w2, b2, w3, b3, w4, b4)


def critic_reference(states, actions, params):
    w1, b1, w2, b2, w3, b3, w4, b4 = params
    xs = jax.nn.relu(states @ w1 + b1)
    xa = jax.nn.relu(actions @ w2 + b2)
    x = jnp.concatenate([xs, xa], axis=1)
    x = jax.nn.relu(x @ w3 + b3)
    return x @ w4 + b4


if __name__ == "__main__":
    batch = 8
    state_size = 16
    action_size = 4
    hidden_size = 32

    key = jax.random.PRNGKey(0)
    k_s, k_a, k_p = jax.random.split(key, 3)
    states = jax.random.normal(k_s, (batch, state_size), jnp.float32)
    actions = jax.random.normal(k_a, (batch, action_size), jnp.float32)
    params = init_critic_params(k_p, state_size, action_size, hidden_size)

    q = critic_forward(states, actions, params)
    q = jax.block_until_ready(q)

    q_ref = critic_reference(states, actions, params)
    assert q.shape == (batch, 1)
    assert jnp.allclose(q, q_ref, atol=1e-5, rtol=1e-5), "mismatch vs reference"

    print("KERNEL_OK")
</pallas_src>

<mosaic_0001>
module attributes {stable_mosaic.version = 11 : i64} {
  func.func @critic_kernel(%arg0: i32, %arg1: memref<8x20xf32, #tpu.memory_space<vmem>>, %arg2: memref<20x32xf32, #tpu.memory_space<vmem>>, %arg3: memref<1x32xf32, #tpu.memory_space<vmem>>, %arg4: memref<32x32xf32, #tpu.memory_space<vmem>>, %arg5: memref<1x32xf32, #tpu.memory_space<vmem>>, %arg6: memref<1x32xf32, #tpu.memory_space<vmem>>, %arg7: memref<1x1xf32, #tpu.memory_space<vmem>>, %arg8: memref<1x8xf32, #tpu.memory_space<vmem>>) attributes {dimension_semantics = [#tpu.dimension_semantics<parallel>], iteration_bounds = array<i64: 1>, scalar_prefetch = 0 : i64, scratch_operands = 0 : i64, tpu.core_type = #tpu.core_type<tc>, window_params = [{transform_indices = @transform_0, window_bounds = array<i64: 8, 20>}, {pipeline_mode = #tpu.pipeline_mode<synchronous>, transform_indices = @transform_1, window_bounds = array<i64: 20, 32>}, {pipeline_mode = #tpu.pipeline_mode<synchronous>, transform_indices = @transform_2, window_bounds = array<i64: 1, 32>}, {pipeline_mode = #tpu.pipeline_mode<synchronous>, transform_indices = @transform_3, window_bounds = array<i64: 32, 32>}, {pipeline_mode = #tpu.pipeline_mode<synchronous>, transform_indices = @transform_4, window_bounds = array<i64: 1, 32>}, {pipeline_mode = #tpu.pipeline_mode<synchronous>, transform_indices = @transform_5, window_bounds = array<i64: 1, 32>}, {pipeline_mode = #tpu.pipeline_mode<synchronous>, transform_indices = @transform_6, window_bounds = array<i64: 1, 1>}, {transform_indices = @transform_7, window_bounds = array<i64: 1, 8>}]} {
    %c0 = arith.constant 0 : index
    %c0_0 = arith.constant 0 : index
    %0 = vector.load %arg1[%c0, %c0_0] : memref<8x20xf32, #tpu.memory_space<vmem>>, vector<8x20xf32>
    %c0_1 = arith.constant 0 : index
    %c0_2 = arith.constant 0 : index
    %1 = vector.load %arg2[%c0_1, %c0_2] : memref<20x32xf32, #tpu.memory_space<vmem>>, vector<20x32xf32>
    %cst = arith.constant dense<0.000000e+00> : vector<8x32xf32>
    %2 = tpu.matmul %0, %1, %cst {dimension_numbers = #tpu.dot_dimension_numbers<[1], [0], [0], [1], [0, 0, 1, 1], [], []>} : vector<8x20xf32>, vector<20x32xf32>, vector<8x32xf32> -> vector<8x32xf32>
    %c0_3 = arith.constant 0 : index
    %c0_4 = arith.constant 0 : index
    %3 = vector.load %arg3[%c0_3, %c0_4] : memref<1x32xf32, #tpu.memory_space<vmem>>, vector<1x32xf32>
    %4 = vector.broadcast %3 : vector<1x32xf32> to vector<8x32xf32>
    %5 = arith.addf %2, %4 : vector<8x32xf32>
    %cst_5 = arith.constant 0.000000e+00 : f32
    %6 = vector.broadcast %cst_5 : f32 to vector<8x32xf32>
    %7 = arith.maximumf %5, %6 : vector<8x32xf32>
    %c0_6 = arith.constant 0 : index
    %c0_7 = arith.constant 0 : index
    %8 = vector.load %arg4[%c0_6, %c0_7] : memref<32x32xf32, #tpu.memory_space<vmem>>, vector<32x32xf32>
    %cst_8 = arith.constant dense<0.000000e+00> : vector<8x32xf32>
    %9 = tpu.matmul %7, %8, %cst_8 {dimension_numbers = #tpu.dot_dimension_numbers<[1], [0], [0], [1], [0, 0, 1, 1], [], []>} : vector<8x32xf32>, vector<32x32xf32>, vector<8x32xf32> -> vector<8x32xf32>
    %c0_9 = arith.constant 0 : index
    %c0_10 = arith.constant 0 : index
    %10 = vector.load %arg5[%c0_9, %c0_10] : memref<1x32xf32, #tpu.memory_space<vmem>>, vector<1x32xf32>
    %11 = vector.broadcast %10 : vector<1x32xf32> to vector<8x32xf32>
    %12 = arith.addf %9, %11 : vector<8x32xf32>
    %cst_11 = arith.constant 0.000000e+00 : f32
    %13 = vector.broadcast %cst_11 : f32 to vector<8x32xf32>
    %14 = arith.maximumf %12, %13 : vector<8x32xf32>
    %c0_12 = arith.constant 0 : index
    %c0_13 = arith.constant 0 : index
    %15 = vector.load %arg6[%c0_12, %c0_13] : memref<1x32xf32, #tpu.memory_space<vmem>>, vector<1x32xf32>
    %cst_14 = arith.constant dense<0.000000e+00> : vector<1x8xf32>
    %16 = tpu.matmul %15, %14, %cst_14 {dimension_numbers = #tpu.dot_dimension_numbers<[1], [1], [0], [0], [0, 0, 1, 0], [], []>} : vector<1x32xf32>, vector<8x32xf32>, vector<1x8xf32> -> vector<1x8xf32>
    %c0_15 = arith.constant 0 : index
    %c0_16 = arith.constant 0 : index
    %17 = vector.load %arg7[%c0_15, %c0_16] : memref<1x1xf32, #tpu.memory_space<vmem>>, vector<1x1xf32>
    %18 = vector.broadcast %17 : vector<1x1xf32> to vector<1x8xf32>
    %19 = arith.addf %16, %18 : vector<1x8xf32>
    %c0_17 = arith.constant 0 : index
    %c0_18 = arith.constant 0 : index
    %20 = vector.load %arg8[%c0_17, %c0_18] : memref<1x8xf32, #tpu.memory_space<vmem>>, vector<1x8xf32>
    tpu.vector_store %arg8[%c0_17, %c0_18], %19 {strides = array<i32>} : memref<1x8xf32, #tpu.memory_space<vmem>>, vector<1x8xf32>,
    return
  }
  func.func @transform_0(%arg0: i32) -> (i32, i32) {
    %c0_i32 = arith.constant 0 : i32
    %c0_i32_0 = arith.constant 0 : i32
    return %arg0, %c0_i32 : i32, i32
  }
  func.func @transform_1(%arg0: i32) -> (i32, i32) {
    %c0_i32 = arith.constant 0 : i32
    %c0_i32_0 = arith.constant 0 : i32
    %c0_i32_1 = arith.constant 0 : i32
    return %c0_i32, %c0_i32_0 : i32, i32
  }
  func.func @transform_2(%arg0: i32) -> (i32, i32) {
    %c0_i32 = arith.constant 0 : i32
    %c0_i32_0 = arith.constant 0 : i32
    %c0_i32_1 = arith.constant 0 : i32
    return %c0_i32, %c0_i32_0 : i32, i32
  }
  func.func @transform_3(%arg0: i32) -> (i32, i32) {
    %c0_i32 = arith.constant 0 : i32
    %c0_i32_0 = arith.constant 0 : i32
    %c0_i32_1 = arith.constant 0 : i32
    return %c0_i32, %c0_i32_0 : i32, i32
  }
  func.func @transform_4(%arg0: i32) -> (i32, i32) {
    %c0_i32 = arith.constant 0 : i32
    %c0_i32_0 = arith.constant 0 : i32
    %c0_i32_1 = arith.constant 0 : i32
    return %c0_i32, %c0_i32_0 : i32, i32
  }
  func.func @transform_5(%arg0: i32) -> (i32, i32) {
    %c0_i32 = arith.constant 0 : i32
    %c0_i32_0 = arith.constant 0 : i32
    %c0_i32_1 = arith.constant 0 : i32
    return %c0_i32, %c0_i32_0 : i32, i32
  }
  func.func @transform_6(%arg0: i32) -> (i32, i32) {
    %c0_i32 = arith.constant 0 : i32
    %c0_i32_0 = arith.constant 0 : i32
    %c0_i32_1 = arith.constant 0 : i32
    return %c0_i32, %c0_i32_0 : i32, i32
  }
  func.func @transform_7(%arg0: i32) -> (i32, i32) {
    %c0_i32 = arith.constant 0 : i32
    %c0_i32_0 = arith.constant 0 : i32
    return %c0_i32, %arg0 : i32, i32
  }
}

</mosaic_0001>

<llo_original>
// kernel: critic_forward.1
$region0: #{critic_forward.1}
  #allocation0 [shape = 'u32[]', space=smem, size = 0x4, offset = 0x4, fixed_abs, tag = 'smem constant byte address 0x4 - core index']
  #allocation1 [shape = 'u32[72,128]{1,0:T(1,128)}', space=vmem, size = 0x9000, scoped, tag = 'internal scratch']
  #allocation2 [shape = 'f32[1,1]{1,0:T(1,128)S(1)}', space=vmem, size = 0x200, scoped, tag = 'scoped memory for critic_forward.1']
  %s0 = inlined_call_operand.vmem [shape: f32[8,20], index: 0, kind: input, shape index: {}]
  %s1 = inlined_call_operand.vmem [shape: f32[20,32], index: 1, kind: input, shape index: {}]
  %s2 = inlined_call_operand.vmem [shape: f32[1,32], index: 2, kind: input, shape index: {}]
  %s3 = inlined_call_operand.vmem [shape: f32[32,32], index: 3, kind: input, shape index: {}]
  %s4 = inlined_call_operand.vmem [shape: f32[1,32], index: 4, kind: input, shape index: {}]
  %s5 = inlined_call_operand.vmem [shape: f32[1,32], index: 5, kind: input, shape index: {}]
  %s6 = inlined_call_operand.<no memory space> [shape: f32[1,1], index: 6, kind: input, shape index: {}]
  %s7 = inlined_call_operand.hbm [shape: f32[1,8], index: 7, kind: output, shape index: {}]
  %s8 = sld [smem:[#allocation0]]
  $region38: #{critic_forward.1} parent=0
    _
  %s10 = ssub.s32 1, %s8
  %s11 = scalar_select 0, %s10, %s8
  %v12 = vstv %s6
  %13 = vst [vmem:[#allocation2] sm:$0x1] %v12
  $region1: #{critic_forward.1} parent=0
    #allocation3 [shape = 'u8[512]{0}', space=vmem, size = 0x400, scoped, tag = 'output window, operand 0, single buffered']
    #allocation4 [shape = 's32[1]{0}', space=sflag, size = 0x4, scoped, tag = 'scoped memory for critic_forward.1']
    %14 = vsyncpa [#allocation4], 0
    // Predicated region
    $region2: #{critic_forward.1} parent=1 // pred_check
      _
    $region3: #{critic_forward.1} parent=1 // pred_check_branch
      %16 = sbr.rel (0) target = $region5
    $region4: #{critic_forward.1} parent=1 // pred_region
      _
    $region5: #{critic_forward.1} parent=1 // pred_fallthru
      _
    // Predicated region
    $region6: #{critic_forward.1} parent=1 // pred_check
      _
    $region7: #{critic_forward.1} parent=1 // pred_check_branch
      %18 = sbr.rel (0) target = $region9
    $region8: #{critic_forward.1} parent=1 // pred_region
      _
    $region9: #{critic_forward.1} parent=1 // pred_fallthru
      _
    // Predicated region
    $region10: #{critic_forward.1} parent=1 // pred_check
      _
    $region11: #{critic_forward.1} parent=1 // pred_check_branch
      %20 = sbr.rel (0) target = $region13
    $region12: #{critic_forward.1} parent=1 // pred_region
      _
    $region13: #{critic_forward.1} parent=1 // pred_fallthru
      _
    // Predicated region
    $region14: #{critic_forward.1} parent=1 // pred_check
      _
    $region15: #{critic_forward.1} parent=1 // pred_check_branch
      %22 = sbr.rel (0) target = $region17
    $region16: #{critic_forward.1} parent=1 // pred_region
      _
    $region17: #{critic_forward.1} parent=1 // pred_fallthru
      _
    // Predicated region
    $region18: #{critic_forward.1} parent=1 // pred_check
      _
    $region19: #{critic_forward.1} parent=1 // pred_check_branch
      %24 = sbr.rel (0) target = $region21
    $region20: #{critic_forward.1} parent=1 // pred_region
      _
    $region21: #{critic_forward.1} parent=1 // pred_fallthru
      _
    // Predicated region
    $region22: #{critic_forward.1} parent=1 // pred_check
      _
    $region23: #{critic_forward.1} parent=1 // pred_check_branch
      %26 = sbr.rel (0) target = $region25
    $region24: #{critic_forward.1} parent=1 // pred_region
      _
    $region25: #{critic_forward.1} parent=1 // pred_fallthru
      _
    // Predicated region
    $region26: #{critic_forward.1} parent=1 // pred_check
      _
    $region27: #{critic_forward.1} parent=1 // pred_check_branch
      %28 = sbr.rel (0) target = $region29
    $region28: #{critic_forward.1} parent=1 // pred_region
      _
    $region29: #{critic_forward.1} parent=1 // pred_fallthru
      _
    %v29 = vld [vmem:[%s0] sm:$0xff]
    %v30 = vld [vmem:[%s1] sm:$0xff]
    %v31 = vld [vmem:[%s1 + $0x8] sm:$0xff]
    %v32 = vld [vmem:[%s1 + $0x10] sm:$0xf]
    %v33 = vld [vmem:[%s2] sm:$0x1]
    %v35 = vperm.slane %v33, 0
    %vm37 = vcmask 162816
    %v39 = vsel %vm37, %v29, 0
    %vm41 = vcmask 1043456
    %v43 = vsel %vm41, %v32, 0
    %45 = vmatpush.msra.mxu0 0.0
    %46 = vmatpush.msra.mxu0 0.0
    %47 = vmatpush.msra.mxu0 0.0
    %48 = vmatpush.msra.mxu0 0.0
    %49 = vmatpush.msra.mxu0 0.0
    %50 = vmatpush.msra.mxu0 0.0
    %51 = vmatpush.msra.mxu0 0.0
    %52 = vmatpush.msra.mxu0 0.0
    %53 = vmatpush.msra.mxu0 0.0
    %54 = vmatpush.msra.mxu0 0.0
    %55 = vmatpush.msra.mxu0 0.0
    %56 = vmatpush.msra.mxu0 0.0
    %57 = vmatpush.msra.mxu0 0.0
    %58 = vmatpush.msra.mxu0 %v43
    %59 = vmatpush.msra.mxu0 %v31
    %60 = vmatpush.msra.mxu0 %v30
    %61 = vmatmul.f32.gmra.mxu0 %v39
    %v62 = vpop.f32.mrf.mxu0
    %v63 = vadd.f32 %v35, %v62
    %64 = vdwg.mxu0
    %v65 = vmax.f32 %v63, 0.0
    %v66 = vld [vmem:[%s3] sm:$0xff]
    %v67 = vld [vmem:[%s3 + $0x8] sm:$0xff]
    %v68 = vld [vmem:[%s3 + $0x10] sm:$0xff]
    %v69 = vld [vmem:[%s3 + $0x18] sm:$0xff]
    %v70 = vld [vmem:[%s4] sm:$0x1]
    %v72 = vperm.slane %v70, 0
    %vm74 = vcmask 261120
    %v76 = vsel %vm74, %v65, 0
    %78 = vmatpush.msra.mxu0 0.0
    %79 = vmatpush.msra.mxu0 0.0
    %80 = vmatpush.msra.mxu0 0.0
    %81 = vmatpush.msra.mxu0 0.0
    %82 = vmatpush.msra.mxu0 0.0
    %83 = vmatpush.msra.mxu0 0.0
    %84 = vmatpush.msra.mxu0 0.0
    %85 = vmatpush.msra.mxu0 0.0
    %86 = vmatpush.msra.mxu0 0.0
    %87 = vmatpush.msra.mxu0 0.0
    %88 = vmatpush.msra.mxu0 0.0
    %89 = vmatpush.msra.mxu0 0.0
    %90 = vmatpush.msra.mxu0 %v69
    %91 = vmatpush.msra.mxu0 %v68
    %92 = vmatpush.msra.mxu0 %v67
    %93 = vmatpush.msra.mxu0 %v66
    %94 = vmatmul.f32.gmra.mxu0 %v76
    %v95 = vpop.f32.mrf.mxu0
    %v96 = vadd.f32 %v72, %v95
    %97 = vdwg.mxu0
    %v98 = vmax.f32 %v96, 0.0
    %v99 = vld [vmem:[%s5] sm:$0x1]
    %v100 = vld [vmem:[#allocation2] sm:$0x1]
    %102 = vset.pattern.permute.xlu0 0
    %103 = vperm.xlu0 %102, %v100
    %v104 = vpop.permute.xlu0 %103
    %v106 = vperm.slane %v104, 0
    %v108 = vsel %vm74, %v99, 0
    %v111 = vsel %vm74, %v98, 0
    %113 = vmatpush.xpose.msra.mxu0 0.0
    %114 = vmatpush.xpose.msra.mxu0 0.0
    %115 = vmatpush.xpose.msra.mxu0 0.0
    %116 = vmatpush.xpose.msra.mxu0 0.0
    %117 = vmatpush.xpose.msra.mxu0 0.0
    %118 = vmatpush.xpose.msra.mxu0 0.0
    %119 = vmatpush.xpose.msra.mxu0 0.0
    %120 = vmatpush.xpose.msra.mxu0 0.0
    %121 = vmatpush.xpose.msra.mxu0 0.0
    %122 = vmatpush.xpose.msra.mxu0 0.0
    %123 = vmatpush.xpose.msra.mxu0 0.0
    %124 = vmatpush.xpose.msra.mxu0 0.0
    %125 = vmatpush.xpose.msra.mxu0 0.0
    %126 = vmatpush.xpose.msra.mxu0 0.0
    %127 = vmatpush.xpose.msra.mxu0 0.0
    %128 = vmatpush.xpose.msra.mxu0 %v111
    %129 = vmatmul.f32.gmra.mxu0 %v108
    %v130 = vpop.f32.mrf.mxu0
    %v131 = vadd.f32 %v106, %v130
    %132 = vdwg.mxu0
    %vm133 = vcmask 57344
    %134 = vst.msk [vmem:[#allocation3] sm:$0x1] %vm133, %v131
    // Predicated region
    $region30: #{critic_forward.1} parent=1 // pred_check
      _
    $region31: #{critic_forward.1} parent=1 // pred_check_branch
      %136 = sbr.rel (0) target = $region33
    $region32: #{critic_forward.1} parent=1 // pred_region
      %138 = vsyncadd [#allocation4], 0
      %s140 = sshll.u32 [#allocation3], 4
      %s141 = int_to_ptr.vmem [resolvable:$true] %s140
      %s142 = sshll.u32 %s7, 4
      %s143 = int_to_ptr.hbm [resolvable:$true] %s142
      %145 = dma.vmem_to_hbm [thread:$0]  %s141, 16, %s143, [#allocation4]
    $region33: #{critic_forward.1} parent=1 // pred_fallthru
      _
    // Predicated region
    $region34: #{critic_forward.1} parent=1 // pred_check
      _
    $region35: #{critic_forward.1} parent=1 // pred_check_branch
      %147 = sbr.rel (0) target = $region37
    $region36: #{critic_forward.1} parent=1 // pred_region
      %149 = dma.done [#allocation4], 16
    $region37: #{critic_forward.1} parent=1 // pred_fallthru
      _
    %150 = vsyncpa [#allocation4], 1

</llo_original>
